<compile_context>
chip_gen: v7x
topology: tpu7x:2x2x1
jax: 0.10.0
libtpu: 0.0.40
codegen_flags: <defaults>
</compile_context>

<pallas_src>
import math

import jax
import jax.numpy as jnp
from jax import lax
from jax.experimental import pallas as pl
from jax.experimental.pallas import tpu as pltpu


# ----------------------------- tiling helpers -------------------------------

_TARGET_BLOCK_BYTES = 1 << 20          # ~1 MiB of input HBM traffic per pipeline step
_MAX_TILE_HW = 8192                    # lane-direction cap per step
_VMEM_LIMIT_BYTES = 32 * 1024 * 1024   # fits v5e / v6e / v7x scoped-VMEM budgets


def _choose_tile_hw(hw, bytes_per_hw):
    """Lane tile along the flattened H*W axis (multiple of 128, or full extent)."""
    tile = (_TARGET_BLOCK_BYTES // max(int(bytes_per_hw), 1)) // 128 * 128
    tile = max(128, min(tile, _MAX_TILE_HW))
    if tile >= hw:
        return hw          # full extent is allowed even if not a multiple of 128
    return tile


def _partition(hw, tile):
    """Split the HW tile stream into P independent partitions (2 TCs on v7x)."""
    n_tiles = -(-hw // tile)
    num_parts = 2 if n_tiles >= 2 else 1
    t_per_part = -(-n_tiles // num_parts)
    needs_mask = (num_parts * t_per_part * tile != hw)
    clamp = (num_parts * t_per_part > n_tiles)
    return n_tiles, num_parts, t_per_part, needs_mask, clamp


def _hw_block_index(t_per_part, n_tiles, clamp):
    def idx(pp, tt):
        i = pp * t_per_part + tt
        if clamp:
            # Duplicated (fully out-of-range) tile is clamped to a valid block
            # index; its contribution is zeroed by the in-kernel mask.
            i = jnp.minimum(i, n_tiles - 1)
        return i
    return idx


# ------------------------------- kernels -------------------------------------

def _make_binary_kernel(threshold, hw, tile, t_per_part, needs_mask):
    use_logit = 0.0 < threshold < 1.0
    logit_thr = math.log(threshold / (1.0 - threshold)) if use_logit else 0.0

    def kernel(pred_ref, true_ref, spt_ref, sp_ref, st_ref):
        t_idx = pl.program_id(1)

        @pl.when(t_idx == 0)
        def _init():
            spt_ref[...] = jnp.zeros_like(spt_ref)
            sp_ref[...] = jnp.zeros_like(sp_ref)
            st_ref[...] = jnp.zeros_like(st_ref)

        x = pred_ref[...].astype(jnp.float32)                       # (N, TILE)
        if use_logit:
            # sigmoid(x) > thr  <=>  x > logit(thr): VALU compare, no EUP sigmoid.
            p = (x > jnp.float32(logit_thr)).astype(jnp.float32)
        else:
            p = (jax.nn.sigmoid(x) > jnp.float32(threshold)).astype(jnp.float32)
        t = true_ref[...].astype(jnp.float32)

        if needs_mask:
            start = (pl.program_id(0) * t_per_part + t_idx) * tile
            valid = hw - start
            lane = lax.broadcasted_iota(jnp.int32, x.shape, 1)
            m = lane < valid
            p = jnp.where(m, p, 0.0)
            t = jnp.where(m, t, 0.0)

        def rsum(a):   # (N, TILE) -> (1, 1, 1)
            return jnp.sum(jnp.sum(a, axis=1, keepdims=True),
                           axis=0, keepdims=True).reshape(1, 1, 1)

        spt_ref[...] += rsum(p * t)
        sp_ref[...] += rsum(p)
        st_ref[...] += rsum(t)

    return kernel


def _make_multiclass_kernel(num_classes, hw, tile, t_per_part, needs_mask):
    c = num_classes

    def kernel(pred_ref, lbl_ref, spt_ref, sp_ref, st_ref):
        t_idx = pl.program_id(1)

        @pl.when(t_idx == 0)
        def _init():
            spt_ref[...] = jnp.zeros_like(spt_ref)
            sp_ref[...] = jnp.zeros_like(sp_ref)
            st_ref[...] = jnp.zeros_like(st_ref)

        x = pred_ref[...].astype(jnp.float32)                       # (N, C, TILE)
        xm = jnp.max(x, axis=1, keepdims=True)
        ex = jnp.exp(x - xm)
        probs = ex / jnp.sum(ex, axis=1, keepdims=True)             # softmax over C

        labels = lbl_ref[...]                                       # (N, TILE) int32
        ch = lax.broadcasted_iota(jnp.int32, (1, c, tile), 1)
        onehot = (labels[:, None, :] == ch).astype(jnp.float32)     # (N, C, TILE)

        if needs_mask:
            start = (pl.program_id(0) * t_per_part + t_idx) * tile
            valid = hw - start
            lane = lax.broadcasted_iota(jnp.int32, probs.shape, 2)
            m = lane < valid
            probs = jnp.where(m, probs, 0.0)
            onehot = jnp.where(m, onehot, 0.0)

        def rsum(a):   # (N, C, TILE) -> (1, C, 1)
            return jnp.sum(jnp.sum(a, axis=2, keepdims=True), axis=0, keepdims=True)

        spt_ref[...] += rsum(probs * onehot)
        sp_ref[...] += rsum(probs)
        st_ref[...] += rsum(onehot)

    return kernel


# ------------------------------- wrappers -------------------------------------

def confusion_matrix_pallas(y_pred, y_true, num_classes=1, threshold=0.5):
    """Returns (tp, fp, fn, tn), each of shape (num_classes,), float32."""
    n, c, h, w = y_pred.shape
    assert c == num_classes, (c, num_classes)
    hw = h * w

    if num_classes == 1:
        pred = y_pred.reshape(n, hw)                       # free reshape, native dtype
        true = y_true.reshape(n, hw)                       # float mask, native dtype
        bytes_per_hw = n * (pred.dtype.itemsize + true.dtype.itemsize)
        tile = _choose_tile_hw(hw, bytes_per_hw)
        n_tiles, num_parts, t_per_part, needs_mask, clamp = _partition(hw, tile)
        hw_idx = _hw_block_index(t_per_part, n_tiles, clamp)
        kernel = _make_binary_kernel(threshold, hw, tile, t_per_part, needs_mask)
        in_specs = [
            pl.BlockSpec((n, tile), lambda pp, tt: (0, hw_idx(pp, tt))),
            pl.BlockSpec((n, tile), lambda pp, tt: (0, hw_idx(pp, tt))),
        ]
        inputs = (pred, true)
    else:
        pred = y_pred.reshape(n, c, hw)                    # free reshape (no transpose)
        labels = y_true.reshape(n, hw).astype(jnp.int32)   # no one-hot materialized
        bytes_per_hw = n * (c * pred.dtype.itemsize + labels.dtype.itemsize)
        tile = _choose_tile_hw(hw, bytes_per_hw)
        n_tiles, num_parts, t_per_part, needs_mask, clamp = _partition(hw, tile)
        hw_idx = _hw_block_index(t_per_part, n_tiles, clamp)
        kernel = _make_multiclass_kernel(num_classes, hw, tile, t_per_part, needs_mask)
        in_specs = [
            pl.BlockSpec((n, c, tile), lambda pp, tt: (0, 0, hw_idx(pp, tt))),
            pl.BlockSpec((n, tile), lambda pp, tt: (0, hw_idx(pp, tt))),
        ]
        inputs = (pred, labels)

    out_shape = tuple(jax.ShapeDtypeStruct((num_parts, num_classes, 1), jnp.float32)
                      for _ in range(3))
    out_specs = tuple(pl.BlockSpec((1, num_classes, 1), lambda pp, tt: (pp, 0, 0))
                      for _ in range(3))

    s_pt, s_p, s_t = pl.pallas_call(
        kernel,
        out_shape=out_shape,
        grid=(num_parts, t_per_part),
        in_specs=in_specs,
        out_specs=out_specs,
        compiler_params=pltpu.CompilerParams(
            dimension_semantics=("parallel", "arbitrary"),
            vmem_limit_bytes=_VMEM_LIMIT_BYTES,
        ),
    )(*inputs)

    # Combine the P per-partition partial sums and recover the confusion matrix
    # (tiny O(num_classes) epilogue done in the wrapper).
    s_pt = jnp.sum(s_pt, axis=0)[:, 0]
    s_p = jnp.sum(s_p, axis=0)[:, 0]
    s_t = jnp.sum(s_t, axis=0)[:, 0]
    m_total = jnp.float32(n * h * w)

    tp = s_pt
    fp = s_p - s_pt
    fn = s_t - s_pt
    tn = m_total - s_p - s_t + s_pt
    return tp, fp, fn, tn


def accuracy_pallas(y_pred, y_true, num_classes=1, threshold=0.5, epsilon=1e-7):
    tp, fp, fn, tn = confusion_matrix_pallas(y_pred, y_true, num_classes, threshold)
    acc = (tp + tn) / (tp + fp + fn + tn + jnp.float32(epsilon))
    return jnp.sum(acc) / num_classes


# ------------------------- pure-JAX reference --------------------------------

def accuracy_ref(y_pred, y_true, num_classes=1, threshold=0.5, epsilon=1e-7):
    if num_classes == 1:
        yp = (jax.nn.sigmoid(y_pred.astype(jnp.float32)) > threshold).astype(jnp.float32)
        yt = y_true.astype(jnp.float32)
    else:
        yp = jax.nn.softmax(y_pred.astype(jnp.float32), axis=1)
        yt = jnp.transpose(jax.nn.one_hot(y_true, num_classes, dtype=jnp.float32),
                           (0, 3, 1, 2))
    axis = (0, 2, 3)
    tp = jnp.sum(yp * yt, axis=axis)
    fp = jnp.sum(yp * (1 - yt), axis=axis)
    fn = jnp.sum((1 - yp) * yt, axis=axis)
    tn = jnp.sum((1 - yp) * (1 - yt), axis=axis)
    acc = (tp + tn) / (tp + fp + fn + tn + epsilon)
    return jnp.sum(acc) / num_classes


if __name__ == "__main__":
    key = jax.random.PRNGKey(0)
    k1, k2, k3, k4, k5, k6, k7, k8 = jax.random.split(key, 8)

    # 1) binary, small (single-tile path)
    N, C, H, W = 2, 1, 16, 16
    yp = jax.random.normal(k1, (N, C, H, W), dtype=jnp.float32)
    yt = (jax.random.uniform(k2, (N, C, H, W)) > 0.5).astype(jnp.float32)
    a = jax.block_until_ready(accuracy_pallas(yp, yt, num_classes=1))
    r = accuracy_ref(yp, yt, num_classes=1)
    assert jnp.allclose(a, r, atol=1e-5, rtol=1e-5), (a, r)

    # 2) multi-class, small (single-tile path)
    NC = 4
    yp = jax.random.normal(k3, (N, NC, H, W), dtype=jnp.float32)
    yt = jax.random.randint(k4, (N, H, W), 0, NC, dtype=jnp.int32)
    a = jax.block_until_ready(accuracy_pallas(yp, yt, num_classes=NC))
    r = accuracy_ref(yp, yt, num_classes=NC)
    assert jnp.allclose(a, r, atol=1e-5, rtol=1e-5), (a, r)

    # 3) binary, big enough to exercise streaming tiles + tail mask + 2-way split
    N, H, W = 8, 255, 255
    yp = jax.random.normal(k5, (N, 1, H, W), dtype=jnp.float32)
    yt = (jax.random.uniform(k6, (N, 1, H, W)) > 0.5).astype(jnp.float32)
    a = jax.block_until_ready(accuracy_pallas(yp, yt, num_classes=1))
    r = accuracy_ref(yp, yt, num_classes=1)
    assert jnp.allclose(a, r, atol=1e-4, rtol=1e-4), (a, r)

    # 4) multi-class, tiled + masked + odd tile count (clamped duplicate tile)
    N, NC, H, W = 4, 4, 184, 184
    yp = jax.random.normal(k7, (N, NC, H, W), dtype=jnp.float32)
    yt = jax.random.randint(k8, (N, H, W), 0, NC, dtype=jnp.int32)
    a = jax.block_until_ready(accuracy_pallas(yp, yt, num_classes=NC))
    r = accuracy_ref(yp, yt, num_classes=NC)
    assert jnp.allclose(a, r, atol=1e-4, rtol=1e-4), (a, r)

    print("KERNEL_OK")
</pallas_src>

<mosaic_0001>
module attributes {stable_mosaic.version = 11 : i64} {
  func.func @kernel(%arg0: i32, %arg1: i32, %arg2: memref<2x256xf32, #tpu.memory_space<vmem>>, %arg3: memref<2x256xf32, #tpu.memory_space<vmem>>, %arg4: memref<1x1x1xf32, #tpu.memory_space<vmem>>, %arg5: memref<1x1x1xf32, #tpu.memory_space<vmem>>, %arg6: memref<1x1x1xf32, #tpu.memory_space<vmem>>) attributes {dimension_semantics = [#tpu.dimension_semantics<parallel>, #tpu.dimension_semantics<arbitrary>], iteration_bounds = array<i64: 1, 1>, scalar_prefetch = 0 : i64, scratch_operands = 0 : i64, tpu.core_type = #tpu.core_type<tc>, window_params = [{transform_indices = @transform_0, window_bounds = array<i64: 2, 256>}, {transform_indices = @transform_1, window_bounds = array<i64: 2, 256>}, {transform_indices = @transform_2, window_bounds = array<i64: 1, 1, 1>}, {transform_indices = @transform_3, window_bounds = array<i64: 1, 1, 1>}, {transform_indices = @transform_4, window_bounds = array<i64: 1, 1, 1>}]} {
    %c0_i32 = arith.constant 0 : i32
    %0 = arith.cmpi eq, %arg1, %c0_i32 : i32
    %1 = arith.extui %0 : i1 to i32
    %c0_i32_0 = arith.constant 0 : i32
    %2 = arith.cmpi ne, %1, %c0_i32_0 : i32
    scf.if %2 {
      %cst_28 = arith.constant 0.000000e+00 : f32
      %34 = vector.broadcast %cst_28 : f32 to vector<1x1x1xf32>
      %c0_29 = arith.constant 0 : index
      %c0_30 = arith.constant 0 : index
      %c0_31 = arith.constant 0 : index
      %35 = vector.load %arg4[%c0_29, %c0_30, %c0_31] : memref<1x1x1xf32, #tpu.memory_space<vmem>>, vector<1x1x1xf32>
      tpu.vector_store %arg4[%c0_29, %c0_30, %c0_31], %34 {strides = array<i32>} : memref<1x1x1xf32, #tpu.memory_space<vmem>>, vector<1x1x1xf32>,
      %cst_32 = arith.constant 0.000000e+00 : f32
      %36 = vector.broadcast %cst_32 : f32 to vector<1x1x1xf32>
      %c0_33 = arith.constant 0 : index
      %c0_34 = arith.constant 0 : index
      %c0_35 = arith.constant 0 : index
      %37 = vector.load %arg5[%c0_33, %c0_34, %c0_35] : memref<1x1x1xf32, #tpu.memory_space<vmem>>, vector<1x1x1xf32>
      tpu.vector_store %arg5[%c0_33, %c0_34, %c0_35], %36 {strides = array<i32>} : memref<1x1x1xf32, #tpu.memory_space<vmem>>, vector<1x1x1xf32>,
      %cst_36 = arith.constant 0.000000e+00 : f32
      %38 = vector.broadcast %cst_36 : f32 to vector<1x1x1xf32>
      %c0_37 = arith.constant 0 : index
      %c0_38 = arith.constant 0 : index
      %c0_39 = arith.constant 0 : index
      %39 = vector.load %arg6[%c0_37, %c0_38, %c0_39] : memref<1x1x1xf32, #tpu.memory_space<vmem>>, vector<1x1x1xf32>
      tpu.vector_store %arg6[%c0_37, %c0_38, %c0_39], %38 {strides = array<i32>} : memref<1x1x1xf32, #tpu.memory_space<vmem>>, vector<1x1x1xf32>,
    } else {
    }
    %c0 = arith.constant 0 : index
    %c0_1 = arith.constant 0 : index
    %3 = vector.load %arg2[%c0, %c0_1] : memref<2x256xf32, #tpu.memory_space<vmem>>, vector<2x256xf32>
    %cst = arith.constant 0.000000e+00 : f32
    %4 = vector.broadcast %cst : f32 to vector<2x256xf32>
    %5 = arith.cmpf ogt, %3, %4 : vector<2x256xf32>
    %6 = arith.extui %5 : vector<2x256xi1> to vector<2x256xi32>
    %7 = arith.sitofp %6 : vector<2x256xi32> to vector<2x256xf32>
    %c0_2 = arith.constant 0 : index
    %c0_3 = arith.constant 0 : index
    %8 = vector.load %arg3[%c0_2, %c0_3] : memref<2x256xf32, #tpu.memory_space<vmem>>, vector<2x256xf32>
    %c0_4 = arith.constant 0 : index
    %c0_5 = arith.constant 0 : index
    %c0_6 = arith.constant 0 : index
    %9 = vector.load %arg4[%c0_4, %c0_5, %c0_6] : memref<1x1x1xf32, #tpu.memory_space<vmem>>, vector<1x1x1xf32>
    %10 = arith.mulf %7, %8 : vector<2x256xf32>
    %cst_7 = arith.constant dense<0.000000e+00> : vector<2xf32>
    %11 = vector.multi_reduction <add>, %10, %cst_7 [1] : vector<2x256xf32> to vector<2xf32>
    %12 = vector.shape_cast %11 : vector<2xf32> to vector<2x1xf32>
    %cst_8 = arith.constant dense<0.000000e+00> : vector<1xf32>
    %13 = vector.multi_reduction <add>, %12, %cst_8 [0] : vector<2x1xf32> to vector<1xf32>
    %14 = vector.shape_cast %13 : vector<1xf32> to vector<1x1xf32>
    %15 = vector.shape_cast %14 : vector<1x1xf32> to vector<1x1x1xf32>
    %16 = arith.addf %9, %15 : vector<1x1x1xf32>
    %c0_9 = arith.constant 0 : index
    %c0_10 = arith.constant 0 : index
    %c0_11 = arith.constant 0 : index
    %17 = vector.load %arg4[%c0_9, %c0_10, %c0_11] : memref<1x1x1xf32, #tpu.memory_space<vmem>>, vector<1x1x1xf32>
    tpu.vector_store %arg4[%c0_9, %c0_10, %c0_11], %16 {strides = array<i32>} : memref<1x1x1xf32, #tpu.memory_space<vmem>>, vector<1x1x1xf32>,
    %c0_12 = arith.constant 0 : index
    %c0_13 = arith.constant 0 : index
    %c0_14 = arith.constant 0 : index
    %18 = vector.load %arg5[%c0_12, %c0_13, %c0_14] : memref<1x1x1xf32, #tpu.memory_space<vmem>>, vector<1x1x1xf32>
    %cst_15 = arith.constant dense<0.000000e+00> : vector<2xf32>
    %19 = vector.multi_reduction <add>, %7, %cst_15 [1] : vector<2x256xf32> to vector<2xf32>
    %20 = vector.shape_cast %19 : vector<2xf32> to vector<2x1xf32>
    %cst_16 = arith.constant dense<0.000000e+00> : vector<1xf32>
    %21 = vector.multi_reduction <add>, %20, %cst_16 [0] : vector<2x1xf32> to vector<1xf32>
    %22 = vector.shape_cast %21 : vector<1xf32> to vector<1x1xf32>
    %23 = vector.shape_cast %22 : vector<1x1xf32> to vector<1x1x1xf32>
    %24 = arith.addf %18, %23 : vector<1x1x1xf32>
    %c0_17 = arith.constant 0 : index
    %c0_18 = arith.constant 0 : index
    %c0_19 = arith.constant 0 : index
    %25 = vector.load %arg5[%c0_17, %c0_18, %c0_19] : memref<1x1x1xf32, #tpu.memory_space<vmem>>, vector<1x1x1xf32>
    tpu.vector_store %arg5[%c0_17, %c0_18, %c0_19], %24 {strides = array<i32>} : memref<1x1x1xf32, #tpu.memory_space<vmem>>, vector<1x1x1xf32>,
    %c0_20 = arith.constant 0 : index
    %c0_21 = arith.constant 0 : index
    %c0_22 = arith.constant 0 : index
    %26 = vector.load %arg6[%c0_20, %c0_21, %c0_22] : memref<1x1x1xf32, #tpu.memory_space<vmem>>, vector<1x1x1xf32>
    %cst_23 = arith.constant dense<0.000000e+00> : vector<2xf32>
    %27 = vector.multi_reduction <add>, %8, %cst_23 [1] : vector<2x256xf32> to vector<2xf32>
    %28 = vector.shape_cast %27 : vector<2xf32> to vector<2x1xf32>
    %cst_24 = arith.constant dense<0.000000e+00> : vector<1xf32>
    %29 = vector.multi_reduction <add>, %28, %cst_24 [0] : vector<2x1xf32> to vector<1xf32>
    %30 = vector.shape_cast %29 : vector<1xf32> to vector<1x1xf32>
    %31 = vector.shape_cast %30 : vector<1x1xf32> to vector<1x1x1xf32>
    %32 = arith.addf %26, %31 : vector<1x1x1xf32>
    %c0_25 = arith.constant 0 : index
    %c0_26 = arith.constant 0 : index
    %c0_27 = arith.constant 0 : index
    %33 = vector.load %arg6[%c0_25, %c0_26, %c0_27] : memref<1x1x1xf32, #tpu.memory_space<vmem>>, vector<1x1x1xf32>
    tpu.vector_store %arg6[%c0_25, %c0_26, %c0_27], %32 {strides = array<i32>} : memref<1x1x1xf32, #tpu.memory_space<vmem>>, vector<1x1x1xf32>,
    return
  }
  func.func @transform_0(%arg0: i32, %arg1: i32) -> (i32, i32) {
    %c1_i32 = arith.constant 1 : i32
    %0 = arith.muli %arg0, %c1_i32 : i32
    %1 = arith.addi %0, %arg1 : i32
    %c0_i32 = arith.constant 0 : i32
    %c0_i32_0 = arith.constant 0 : i32
    return %c0_i32, %1 : i32, i32
  }
  func.func @transform_1(%arg0: i32, %arg1: i32) -> (i32, i32) {
    %c1_i32 = arith.constant 1 : i32
    %0 = arith.muli %arg0, %c1_i32 : i32
    %1 = arith.addi %0, %arg1 : i32
    %c0_i32 = arith.constant 0 : i32
    %c0_i32_0 = arith.constant 0 : i32
    return %c0_i32, %1 : i32, i32
  }
  func.func @transform_2(%arg0: i32, %arg1: i32) -> (i32, i32, i32) {
    %c0_i32 = arith.constant 0 : i32
    %c0_i32_0 = arith.constant 0 : i32
    %c0_i32_1 = arith.constant 0 : i32
    return %arg0, %c0_i32, %c0_i32_0 : i32, i32, i32
  }
  func.func @transform_3(%arg0: i32, %arg1: i32) -> (i32, i32, i32) {
    %c0_i32 = arith.constant 0 : i32
    %c0_i32_0 = arith.constant 0 : i32
    %c0_i32_1 = arith.constant 0 : i32
    return %arg0, %c0_i32, %c0_i32_0 : i32, i32, i32
  }
  func.func @transform_4(%arg0: i32, %arg1: i32) -> (i32, i32, i32) {
    %c0_i32 = arith.constant 0 : i32
    %c0_i32_0 = arith.constant 0 : i32
    %c0_i32_1 = arith.constant 0 : i32
    return %arg0, %c0_i32, %c0_i32_0 : i32, i32, i32
  }
}

</mosaic_0001>

<llo_original>
// kernel: tpu_custom_call.1
$region0: #{tpu_custom_call.1}
  #allocation0 [shape = 'u32[]', space=smem, size = 0x4, offset = 0x4, fixed_abs, tag = 'smem constant byte address 0x4 - core index']
  #allocation1 [shape = 'u32[144,128]{1,0:T(1,128)}', space=vmem, size = 0x12000, scoped, tag = 'internal scratch']
  %s0 = inlined_call_operand.hbm [shape: f32[2,256], index: 0, kind: input, shape index: {}]
  %s1 = inlined_call_operand.hbm [shape: f32[2,256], index: 1, kind: input, shape index: {}]
  %s2 = inlined_call_operand.hbm [shape: f32[1,1,1], index: 2, kind: output, shape index: {0}]
  %s3 = inlined_call_operand.hbm [shape: f32[1,1,1], index: 3, kind: output, shape index: {1}]
  %s4 = inlined_call_operand.hbm [shape: f32[1,1,1], index: 4, kind: output, shape index: {2}]
  %5 = xla_tuple %s2, %s3, %s4
  %s6 = sld [smem:[#allocation0]]
  $region46: #{tpu_custom_call.1} parent=0
    _
  %s8 = ssub.s32 1, %s6
  %s9 = scalar_select 0, %s8, %s6
  $region1: #{tpu_custom_call.1} parent=0
    #allocation2 [shape = 'u8[2048]{0}', space=vmem, size = 0x800, scoped, tag = 'input window, operand 0, single buffered']
    #allocation3 [shape = 's32[1]{0}', space=sflag, size = 0x4, scoped, tag = 'scoped memory for tpu_custom_call.1']
    #allocation4 [shape = 's32[1]{0}', space=sflag, size = 0x4, scoped, tag = 'scoped memory for tpu_custom_call.1']
    #allocation5 [shape = 'u8[2048]{0}', space=vmem, size = 0x800, scoped, tag = 'input window, operand 1, single buffered']
    #allocation6 [shape = 's32[1]{0}', space=sflag, size = 0x4, scoped, tag = 'scoped memory for tpu_custom_call.1']
    #allocation7 [shape = 'u8[512]{0}', space=vmem, size = 0x400, scoped, tag = 'output window, operand 0, single buffered']
    #allocation8 [shape = 'u8[512]{0}', space=vmem, size = 0x400, scoped, tag = 'output window, operand 1, single buffered']
    #allocation9 [shape = 's32[1]{0}', space=sflag, size = 0x4, scoped, tag = 'scoped memory for tpu_custom_call.1']
    #allocation10 [shape = 'u8[512]{0}', space=vmem, size = 0x400, scoped, tag = 'output window, operand 2, single buffered']
    %10 = vsyncpa [#allocation3], 0
    %11 = vsyncpa [#allocation6], 0
    %12 = vsyncpa [#allocation4], 0
    %13 = vsyncpa [#allocation9], 0
    // Predicated region
    $region2: #{tpu_custom_call.1} parent=1 // pred_check
      _
    $region3: #{tpu_custom_call.1} parent=1 // pred_check_branch
      %15 = sbr.rel (0) target = $region5
    $region4: #{tpu_custom_call.1} parent=1 // pred_region
      %s16 = sadd.s32 0, 0
      %s17 = smul.u32 2, %s16
      %s19 = ssub.s32 64, 64
      %20 = vsyncadd [#allocation3], %s19
      %s21 = smul.addr %s17, 32
      %s22 = scalar_lea.hbm %s0, %s21
      %s24 = sshll.u32 [#allocation2], 4
      %s25 = int_to_ptr.vmem [resolvable:$true] %s24
      %27 = dma.hbm_to_vmem [thread:$0]  %s22, 64, %s25, [#allocation3]
    $region5: #{tpu_custom_call.1} parent=1 // pred_fallthru
      _
    // Predicated region
    $region6: #{tpu_custom_call.1} parent=1 // pred_check
      _
    $region7: #{tpu_custom_call.1} parent=1 // pred_check_branch
      %29 = sbr.rel (0) target = $region9
    $region8: #{tpu_custom_call.1} parent=1 // pred_region
      %s30 = sadd.s32 0, 0
      %s31 = smul.u32 2, %s30
      %s33 = ssub.s32 64, 64
      %34 = vsyncadd [#allocation6], %s33
      %s35 = smul.addr %s31, 32
      %s36 = scalar_lea.hbm %s1, %s35
      %s38 = sshll.u32 [#allocation5], 4
      %s39 = int_to_ptr.vmem [resolvable:$true] %s38
      %41 = dma.hbm_to_vmem [thread:$0]  %s36, 64, %s39, [#allocation6]
    $region9: #{tpu_custom_call.1} parent=1 // pred_fallthru
      _
    // Predicated region
    $region10: #{tpu_custom_call.1} parent=1 // pred_check
      _
    $region11: #{tpu_custom_call.1} parent=1 // pred_check_branch
      %43 = sbr.rel (0) target = $region13
    $region12: #{tpu_custom_call.1} parent=1 // pred_region
      %44 = dma.done [#allocation3], 64
    $region13: #{tpu_custom_call.1} parent=1 // pred_fallthru
      _
    // Predicated region
    $region14: #{tpu_custom_call.1} parent=1 // pred_check
      _
    $region15: #{tpu_custom_call.1} parent=1 // pred_check_branch
      %46 = sbr.rel (0) target = $region17
    $region16: #{tpu_custom_call.1} parent=1 // pred_region
      %47 = dma.done [#allocation6], 64
    $region17: #{tpu_custom_call.1} parent=1 // pred_fallthru
      _
    %s48 = sadd.s32 0, 0
    %s49 = smul.u32 2, %s48
    %s50 = sadd.s32 0, 0
    %s51 = smul.u32 2, %s50
    %p52 = scmp.eq.s32.totalorder 0, 0
    // Predicated region
    $region18: #{tpu_custom_call.1} parent=1 // pred_check
      %p53 = pneg %p52
    $region19: #{tpu_custom_call.1} parent=1 // pred_check_branch
      %55 = sbr.rel (%p53) target = $region21
    $region20: #{tpu_custom_call.1} parent=1 // pred_region
      %vm56 = vcmask 0
      %57 = vst.msk [vmem:[#allocation7] sm:$0x1] %vm56, 0.0
      %58 = vst.msk [vmem:[#allocation8] sm:$0x1] %vm56, 0.0
      %59 = vst.msk [vmem:[#allocation10] sm:$0x1] %vm56, 0.0
    $region21: #{tpu_custom_call.1} parent=1 // pred_fallthru
      _
    %v60 = vld [vmem:[#allocation2] sm:$0xf]
    %vm61 = vcmp.gt.f32.partialorder %v60, 0.0
    %v62 = vsel %vm61, 1, 0
    %v63 = vcvt.s32.f32 %v62
    %v64 = vld [vmem:[#allocation5] sm:$0xf]
    %v65 = vld [vmem:[#allocation7] sm:$0x1]
    %v66 = vmul.f32 %v63, %v64
    %v69 = vunpack.c.l.s4 1983009808
    %v70 = vunpack.c.0.s8 %v69
    %v71 = vlaneseq
    %v72 = vshrl.u32 %v71, 7
    %v73 = vsub.s32 %v70, %v72
    %v74 = vrot.slane %v66, %v73
    %v75 = vcombine.high %v74, %v74
    %vm78 = vcmask 1041408
    %v79 = vsel %vm78, %v74, 0.0
    %v80 = vsel %vm78, %v75, 0.0
    %v81 = vadd.f32 %v79, %v80
    %82 = vadd.xlane.f32.xlu0 %v81
    %v83 = vpop.xlane.xlu0 %82
    %v84 = vsel %vm78, %v83, 0.0
    %v85 = vrot.slane %v84, 4
    %v86 = vadd.f32 %v84, %v85
    %v87 = vrot.slane %v86, 2
    %v88 = vadd.f32 %v86, %v87
    %v89 = vrot.slane %v88, 1
    %v90 = vadd.f32 %v88, %v89
    %v91 = vadd.f32 %v65, %v90
    %vm92 = vcmask 0
    %93 = vst.msk [vmem:[#allocation7] sm:$0x1] %vm92, %v91
    %v94 = vld [vmem:[#allocation8] sm:$0x1]
    %v97 = vunpack.c.l.s4 1983009808
    %v98 = vunpack.c.0.s8 %v97
    %v99 = vlaneseq
    %v100 = vshrl.u32 %v99, 7
    %v101 = vsub.s32 %v98, %v100
    %v102 = vrot.slane %v63, %v101
    %v103 = vcombine.high %v102, %v102
    %v106 = vsel %vm78, %v102, 0.0
    %v107 = vsel %vm78, %v103, 0.0
    %v108 = vadd.f32 %v106, %v107
    %109 = vadd.xlane.f32.xlu0 %v108
    %v110 = vpop.xlane.xlu0 %109
    %v111 = vsel %vm78, %v110, 0.0
    %v112 = vrot.slane %v111, 4
    %v113 = vadd.f32 %v111, %v112
    %v114 = vrot.slane %v113, 2
    %v115 = vadd.f32 %v113, %v114
    %v116 = vrot.slane %v115, 1
    %v117 = vadd.f32 %v115, %v116
    %v118 = vadd.f32 %v94, %v117
    %119 = vst.msk [vmem:[#allocation8] sm:$0x1] %vm92, %v118
    %v120 = vld [vmem:[#allocation10] sm:$0x1]
    %v123 = vunpack.c.l.s4 1983009808
    %v124 = vunpack.c.0.s8 %v123
    %v125 = vlaneseq
    %v126 = vshrl.u32 %v125, 7
    %v127 = vsub.s32 %v124, %v126
    %v128 = vrot.slane %v64, %v127
    %v129 = vcombine.high %v128, %v128
    %v132 = vsel %vm78, %v128, 0.0
    %v133 = vsel %vm78, %v129, 0.0
    %v134 = vadd.f32 %v132, %v133
    %135 = vadd.xlane.f32.xlu0 %v134
    %v136 = vpop.xlane.xlu0 %135
    %v137 = vsel %vm78, %v136, 0.0
    %v138 = vrot.slane %v137, 4
    %v139 = vadd.f32 %v137, %v138
    %v140 = vrot.slane %v139, 2
    %v141 = vadd.f32 %v139, %v140
    %v142 = vrot.slane %v141, 1
    %v143 = vadd.f32 %v141, %v142
    %v144 = vadd.f32 %v120, %v143
    %145 = vst.msk [vmem:[#allocation10] sm:$0x1] %vm92, %v144
    // Predicated region
    $region22: #{tpu_custom_call.1} parent=1 // pred_check
      _
    $region23: #{tpu_custom_call.1} parent=1 // pred_check_branch
      %147 = sbr.rel (0) target = $region25
    $region24: #{tpu_custom_call.1} parent=1 // pred_region
      %s149 = ssub.s32 16, 16
      %150 = vsyncadd [#allocation4], %s149
      %s152 = sshll.u32 [#allocation7], 4
      %s153 = int_to_ptr.vmem [resolvable:$true] %s152
      %155 = dma.vmem_to_hbm [thread:$0]  %s153, 16, %s2, [#allocation4]
    $region25: #{tpu_custom_call.1} parent=1 // pred_fallthru
      _
    // Predicated region
    $region26: #{tpu_custom_call.1} parent=1 // pred_check
      _
    $region27: #{tpu_custom_call.1} parent=1 // pred_check_branch
      %157 = sbr.rel (0) target = $region29
    $region28: #{tpu_custom_call.1} parent=1 // pred_region
      %s159 = ssub.s32 16, 16
      %160 = vsyncadd [#allocation9], %s159
      %s162 = sshll.u32 [#allocation8], 4
      %s163 = int_to_ptr.vmem [resolvable:$true] %s162
      %165 = dma.vmem_to_hbm [thread:$0]  %s163, 16, %s3, [#allocation9]
    $region29: #{tpu_custom_call.1} parent=1 // pred_fallthru
      _
    // Predicated region
    $region30: #{tpu_custom_call.1} parent=1 // pred_check
      _
    $region31: #{tpu_custom_call.1} parent=1 // pred_check_branch
      %167 = sbr.rel (0) target = $region33
    $region32: #{tpu_custom_call.1} parent=1 // pred_region
      %s169 = ssub.s32 16, 16
      %170 = vsyncadd [#allocation9], %s169
      %s172 = sshll.u32 [#allocation10], 4
      %s173 = int_to_ptr.vmem [resolvable:$true] %s172
      %175 = dma.vmem_to_hbm [thread:$0]  %s173, 16, %s4, [#allocation9]
    $region33: #{tpu_custom_call.1} parent=1 // pred_fallthru
      _
    // Predicated region
    $region34: #{tpu_custom_call.1} parent=1 // pred_check
      _
    $region35: #{tpu_custom_call.1} parent=1 // pred_check_branch
      %177 = sbr.rel (0) target = $region37
    $region36: #{tpu_custom_call.1} parent=1 // pred_region
      %178 = dma.done [#allocation4], 16
    $region37: #{tpu_custom_call.1} parent=1 // pred_fallthru
      _
    // Predicated region
    $region38: #{tpu_custom_call.1} parent=1 // pred_check
      _
    $region39: #{tpu_custom_call.1} parent=1 // pred_check_branch
      %180 = sbr.rel (0) target = $region41
    $region40: #{tpu_custom_call.1} parent=1 // pred_region
      %181 = dma.done [#allocation9], 16
    $region41: #{tpu_custom_call.1} parent=1 // pred_fallthru
      _
    // Predicated region
    $region42: #{tpu_custom_call.1} parent=1 // pred_check
      _
    $region43: #{tpu_custom_call.1} parent=1 // pred_check_branch
      %183 = sbr.rel (0) target = $region45
    $region44: #{tpu_custom_call.1} parent=1 // pred_region
      %184 = dma.done [#allocation9], 16
    $region45: #{tpu_custom_call.1} parent=1 // pred_fallthru
      _
    %185 = vsyncpa [#allocation3], 1
    %186 = vsyncpa [#allocation6], 1
    %187 = vsyncpa [#allocation4], 1
    %188 = vsyncpa [#allocation9], 1

</llo_original>
